<compile_context>
chip_gen: v7x
topology: tpu7x:2x2x1
jax: 0.10.0
libtpu: 0.0.40
codegen_flags: <defaults>
</compile_context>

<pallas_src>
import jax
import jax.numpy as jnp
from jax.experimental import pallas as pl
from jax.experimental.pallas import tpu as pltpu


def _round_up(x: int, m: int) -> int:
    return ((x + m - 1) // m) * m


def _linear_bias_relu_kernel(x_ref, w_ref, b_ref, o_ref, acc_ref):
    """Computes one (tm, tn) output tile; K is the innermost grid axis."""
    k = pl.program_id(2)

    @pl.when(k == 0)
    def _():
        acc_ref[...] = jnp.zeros_like(acc_ref)

    # Inner loop is a pure MXU accumulate (no bias / ReLU on partial sums).
    acc_ref[...] += jnp.dot(x_ref[...], w_ref[...],
                            preferred_element_type=jnp.float32)

    @pl.when(k == pl.num_programs(2) - 1)
    def _():
        out = acc_ref[...] + b_ref[...]          # (tm, tn) + (1, tn) broadcast
        o_ref[...] = jnp.maximum(out, 0.0).astype(o_ref.dtype)


def lazy_linear_block(x, w, b, dropout_p: float = 0.0, *,
                      compute_dtype=None, force_pallas: bool = False):
    """Forward pass of LazyLinearBlock: relu(x @ w + b), dropout(p=0) == identity.

    x: (B, K) float
    w: (K, N)   (== PyTorch fc.weight.T)
    b: (N,)
    compute_dtype: optionally cast x/w (e.g. jnp.bfloat16) — accumulation stays f32.
    """
    if dropout_p != 0.0:
        # TODO(synk): training-mode dropout (pltpu.prng_random_bits mask) not implemented.
        raise NotImplementedError("dropout_p > 0 not supported by this kernel")

    B, K = x.shape
    K2, N = w.shape
    assert K == K2, "in_features mismatch"
    out_dtype = x.dtype

    # Tiny shapes: launch + per-step overhead dwarfs the FLOPs -> let XLA fuse.
    if not force_pallas and (K < 128 or N < 128):
        return jnp.maximum(x @ w + b, 0.0).astype(out_dtype)

    if compute_dtype is not None:
        x = x.astype(compute_dtype)
        w = w.astype(compute_dtype)

    # Tile sizes: lane-dense (128-multiples on the last axes, matching v5e's
    # 128-wide MXU too) and well under v7x's 32 MiB scoped-VMEM default even
    # with double-buffered inputs + resident f32 accumulator.
    tm = min(256, _round_up(B, 8))
    tn = min(512, _round_up(N, 128))
    tk = min(512, _round_up(K, 128))

    Mp, Kp, Np = _round_up(B, tm), _round_up(K, tk), _round_up(N, tn)

    # Zero-pad to tile multiples (padded K contributes 0 to the dot; padded
    # rows/cols are sliced off below).
    if (Mp, Kp) != (B, K):
        x = jnp.pad(x, ((0, Mp - B), (0, Kp - K)))
    if (Kp, Np) != (K, N):
        w = jnp.pad(w, ((0, Kp - K), (0, Np - N)))
    b2d = b.reshape(1, N)
    if Np != N:
        b2d = jnp.pad(b2d, ((0, 0), (0, Np - N)))

    grid = (Mp // tm, Np // tn, Kp // tk)
    in_bytes = jnp.dtype(x.dtype).itemsize
    out_bytes = jnp.dtype(out_dtype).itemsize
    cost = pl.CostEstimate(
        flops=2 * Mp * Kp * Np,
        bytes_accessed=in_bytes * (Mp * Kp + Kp * Np) + out_bytes * Mp * Np,
        transcendentals=0,
    )

    out = pl.pallas_call(
        _linear_bias_relu_kernel,
        out_shape=jax.ShapeDtypeStruct((Mp, Np), out_dtype),
        grid_spec=pltpu.PrefetchScalarGridSpec(
            num_scalar_prefetch=0,
            grid=grid,
            in_specs=[
                pl.BlockSpec((tm, tk), lambda i, j, k: (i, k)),   # x tile
                pl.BlockSpec((tk, tn), lambda i, j, k: (k, j)),   # w tile
                pl.BlockSpec((1, tn), lambda i, j, k: (0, j)),    # bias tile
            ],
            out_specs=pl.BlockSpec((tm, tn), lambda i, j, k: (i, j)),
            scratch_shapes=[pltpu.VMEM((tm, tn), jnp.float32)],
        ),
        compiler_params=pltpu.CompilerParams(
            dimension_semantics=("parallel", "parallel", "arbitrary"),
            vmem_limit_bytes=64 * 1024 * 1024,
        ),
        cost_estimate=cost,
    )(x, w, b2d)

    if (Mp, Np) != (B, N):
        out = out[:B, :N]
    return out


if __name__ == "__main__":
    key = jax.random.PRNGKey(0)
    kx, kw, kb, kx2, kw2, kb2 = jax.random.split(key, 6)

    # --- Main case: lane-dense shapes that take the Pallas path. ---
    batch, in_features, out_features = 32, 256, 256
    bound = 1.0 / (in_features ** 0.5)
    x = jax.random.normal(kx, (batch, in_features), dtype=jnp.float32)
    w = jax.random.uniform(kw, (in_features, out_features),
                           minval=-bound, maxval=bound, dtype=jnp.float32)
    b = jax.random.uniform(kb, (out_features,),
                           minval=-bound, maxval=bound, dtype=jnp.float32)

    y = lazy_linear_block(x, w, b)
    jax.block_until_ready(y)
    y_ref = jnp.maximum(x @ w + b, 0.0)
    assert y.shape == y_ref.shape
    assert jnp.allclose(y, y_ref, atol=1e-5, rtol=1e-5), "mismatch vs reference (aligned)"

    # --- Ragged case: exercises wrapper padding + output slicing. ---
    B2, K2, N2 = 10, 200, 160
    bound2 = 1.0 / (K2 ** 0.5)
    x2 = jax.random.normal(kx2, (B2, K2), dtype=jnp.float32)
    w2 = jax.random.uniform(kw2, (K2, N2), minval=-bound2, maxval=bound2,
                            dtype=jnp.float32)
    b2 = jax.random.uniform(kb2, (N2,), minval=-bound2, maxval=bound2,
                            dtype=jnp.float32)
    y2 = lazy_linear_block(x2, w2, b2, force_pallas=True)
    jax.block_until_ready(y2)
    y2_ref = jnp.maximum(x2 @ w2 + b2, 0.0)
    assert y2.shape == y2_ref.shape
    assert jnp.allclose(y2, y2_ref, atol=1e-5, rtol=1e-5), "mismatch vs reference (padded)"

    print("KERNEL_OK")
</pallas_src>

<mosaic_0001>
module attributes {stable_mosaic.version = 11 : i64} {
  func.func @_linear_bias_relu_kernel(%arg0: i32, %arg1: i32, %arg2: i32, %arg3: memref<32x256xf32, #tpu.memory_space<vmem>>, %arg4: memref<256x256xf32, #tpu.memory_space<vmem>>, %arg5: memref<1x256xf32, #tpu.memory_space<vmem>>, %arg6: memref<32x256xf32, #tpu.memory_space<vmem>>, %arg7: memref<32x256xf32, #tpu.memory_space<vmem>>) attributes {dimension_semantics = [#tpu.dimension_semantics<parallel>, #tpu.dimension_semantics<parallel>, #tpu.dimension_semantics<arbitrary>], iteration_bounds = array<i64: 1, 1, 1>, scalar_prefetch = 0 : i64, scratch_operands = 1 : i64, tpu.core_type = #tpu.core_type<tc>, window_params = [{transform_indices = @transform_0, window_bounds = array<i64: 32, 256>}, {transform_indices = @transform_1, window_bounds = array<i64: 256, 256>}, {transform_indices = @transform_2, window_bounds = array<i64: 1, 256>}, {transform_indices = @transform_3, window_bounds = array<i64: 32, 256>}]} {
    %c0_i32 = arith.constant 0 : i32
    %0 = arith.cmpi eq, %arg2, %c0_i32 : i32
    %1 = arith.extui %0 : i1 to i32
    %c0_i32_0 = arith.constant 0 : i32
    %2 = arith.cmpi ne, %1, %c0_i32_0 : i32
    scf.if %2 {
      %cst_10 = arith.constant 0.000000e+00 : f32
      %12 = vector.broadcast %cst_10 : f32 to vector<32x256xf32>
      %c0_11 = arith.constant 0 : index
      %c0_12 = arith.constant 0 : index
      %13 = vector.load %arg7[%c0_11, %c0_12] : memref<32x256xf32, #tpu.memory_space<vmem>>, vector<32x256xf32>
      tpu.vector_store %arg7[%c0_11, %c0_12], %12 {strides = array<i32>} : memref<32x256xf32, #tpu.memory_space<vmem>>, vector<32x256xf32>,
    } else {
    }
    %c0 = arith.constant 0 : index
    %c0_1 = arith.constant 0 : index
    %3 = vector.load %arg7[%c0, %c0_1] : memref<32x256xf32, #tpu.memory_space<vmem>>, vector<32x256xf32>
    %c0_2 = arith.constant 0 : index
    %c0_3 = arith.constant 0 : index
    %4 = vector.load %arg3[%c0_2, %c0_3] : memref<32x256xf32, #tpu.memory_space<vmem>>, vector<32x256xf32>
    %c0_4 = arith.constant 0 : index
    %c0_5 = arith.constant 0 : index
    %5 = vector.load %arg4[%c0_4, %c0_5] : memref<256x256xf32, #tpu.memory_space<vmem>>, vector<256x256xf32>
    %cst = arith.constant dense<0.000000e+00> : vector<32x256xf32>
    %6 = tpu.matmul %4, %5, %cst {dimension_numbers = #tpu.dot_dimension_numbers<[1], [0], [0], [1], [0, 0, 1, 1], [], []>} : vector<32x256xf32>, vector<256x256xf32>, vector<32x256xf32> -> vector<32x256xf32>
    %7 = arith.addf %3, %6 : vector<32x256xf32>
    %c0_6 = arith.constant 0 : index
    %c0_7 = arith.constant 0 : index
    %8 = vector.load %arg7[%c0_6, %c0_7] : memref<32x256xf32, #tpu.memory_space<vmem>>, vector<32x256xf32>
    tpu.vector_store %arg7[%c0_6, %c0_7], %7 {strides = array<i32>} : memref<32x256xf32, #tpu.memory_space<vmem>>, vector<32x256xf32>,
    %c0_i32_8 = arith.constant 0 : i32
    %9 = arith.cmpi eq, %arg2, %c0_i32_8 : i32
    %10 = arith.extui %9 : i1 to i32
    %c0_i32_9 = arith.constant 0 : i32
    %11 = arith.cmpi ne, %10, %c0_i32_9 : i32
    scf.if %11 {
      %c0_10 = arith.constant 0 : index
      %c0_11 = arith.constant 0 : index
      %12 = vector.load %arg7[%c0_10, %c0_11] : memref<32x256xf32, #tpu.memory_space<vmem>>, vector<32x256xf32>
      %c0_12 = arith.constant 0 : index
      %c0_13 = arith.constant 0 : index
      %13 = vector.load %arg5[%c0_12, %c0_13] : memref<1x256xf32, #tpu.memory_space<vmem>>, vector<1x256xf32>
      %14 = vector.broadcast %13 : vector<1x256xf32> to vector<32x256xf32>
      %15 = arith.addf %12, %14 : vector<32x256xf32>
      %cst_14 = arith.constant 0.000000e+00 : f32
      %16 = vector.broadcast %cst_14 : f32 to vector<32x256xf32>
      %17 = arith.maximumf %15, %16 : vector<32x256xf32>
      %c0_15 = arith.constant 0 : index
      %c0_16 = arith.constant 0 : index
      %18 = vector.load %arg6[%c0_15, %c0_16] : memref<32x256xf32, #tpu.memory_space<vmem>>, vector<32x256xf32>
      tpu.vector_store %arg6[%c0_15, %c0_16], %17 {strides = array<i32>} : memref<32x256xf32, #tpu.memory_space<vmem>>, vector<32x256xf32>,
    } else {
    }
    return
  }
  func.func @transform_0(%arg0: i32, %arg1: i32, %arg2: i32) -> (i32, i32) {
    %c0_i32 = arith.constant 0 : i32
    return %arg0, %arg2 : i32, i32
  }
  func.func @transform_1(%arg0: i32, %arg1: i32, %arg2: i32) -> (i32, i32) {
    %c0_i32 = arith.constant 0 : i32
    return %arg2, %arg1 : i32, i32
  }
  func.func @transform_2(%arg0: i32, %arg1: i32, %arg2: i32) -> (i32, i32) {
    %c0_i32 = arith.constant 0 : i32
    %c0_i32_0 = arith.constant 0 : i32
    return %c0_i32, %arg1 : i32, i32
  }
  func.func @transform_3(%arg0: i32, %arg1: i32, %arg2: i32) -> (i32, i32) {
    %c0_i32 = arith.constant 0 : i32
    return %arg0, %arg1 : i32, i32
  }
}

</mosaic_0001>

<llo_original>
// kernel: tpu_custom_call.1
$region0: #{tpu_custom_call.1}
  #allocation0 [shape = 'u32[]', space=smem, size = 0x4, offset = 0x4, fixed_abs, tag = 'smem constant byte address 0x4 - core index']
  #allocation1 [shape = 'u32[144,128]{1,0:T(1,128)}', space=vmem, size = 0x12000, scoped, tag = 'internal scratch']
  #allocation2 [shape = 'f32[32,256]{1,0:T(8,128)}', space=vmem, size = 0x8000, scoped, tag = 'scratch operand']
  %s0 = inlined_call_operand.hbm [shape: f32[32,256], index: 0, kind: input, shape index: {}]
  %s1 = inlined_call_operand.hbm [shape: f32[256,256], index: 1, kind: input, shape index: {}]
  %s2 = inlined_call_operand.hbm [shape: f32[1,256], index: 2, kind: input, shape index: {}]
  %s3 = inlined_call_operand.hbm [shape: f32[32,256], index: 3, kind: output, shape index: {}]
  %s4 = sld [smem:[#allocation0]]
  $region42: #{tpu_custom_call.1} parent=0
    _
  %s6 = ssub.s32 1, %s4
  %s7 = scalar_select 0, %s6, %s4
  $region1: #{tpu_custom_call.1} parent=0
    #allocation3 [shape = 'u8[32768]{0}', space=vmem, size = 0x8000, scoped, tag = 'input window, operand 0, single buffered']
    #allocation4 [shape = 's32[1]{0}', space=sflag, size = 0x4, scoped, tag = 'scoped memory for tpu_custom_call.1']
    #allocation5 [shape = 's32[1]{0}', space=sflag, size = 0x4, scoped, tag = 'scoped memory for tpu_custom_call.1']
    #allocation6 [shape = 'u8[262144]{0}', space=vmem, size = 0x40000, scoped, tag = 'input window, operand 1, single buffered']
    #allocation7 [shape = 's32[1]{0}', space=sflag, size = 0x4, scoped, tag = 'scoped memory for tpu_custom_call.1']
    #allocation8 [shape = 'u8[1024]{0}', space=vmem, size = 0x400, scoped, tag = 'input window, operand 2, single buffered']
    #allocation9 [shape = 'u8[32768]{0}', space=vmem, size = 0x8000, scoped, tag = 'output window, operand 0, single buffered']
    %8 = vsyncpa [#allocation4], 0
    %9 = vsyncpa [#allocation7], 0
    %10 = vsyncpa [#allocation5], 0
    // Predicated region
    $region2: #{tpu_custom_call.1} parent=1 // pred_check
      _
    $region3: #{tpu_custom_call.1} parent=1 // pred_check_branch
      %12 = sbr.rel (0) target = $region5
    $region4: #{tpu_custom_call.1} parent=1 // pred_region
      %s14 = ssub.s32 1024, 1024
      %15 = vsyncadd [#allocation4], %s14
      %s16 = sshll.u32 [#allocation3], 4
      %s17 = int_to_ptr.vmem [resolvable:$true] %s16
      %22 = dma.hbm_to_vmem [thread:$0]  %s0, 1024, %s17, [#allocation4], 256, 256, 16
    $region5: #{tpu_custom_call.1} parent=1 // pred_fallthru
      _
    // Predicated region
    $region6: #{tpu_custom_call.1} parent=1 // pred_check
      _
    $region7: #{tpu_custom_call.1} parent=1 // pred_check_branch
      %24 = sbr.rel (0) target = $region9
    $region8: #{tpu_custom_call.1} parent=1 // pred_region
      %s26 = ssub.s32 8192, 8192
      %27 = vsyncadd [#allocation7], %s26
      %s28 = sshll.u32 [#allocation6], 4
      %s29 = int_to_ptr.vmem [resolvable:$true] %s28
      %34 = dma.hbm_to_vmem [thread:$0]  %s1, 8192, %s29, [#allocation7], 256, 256, 16
    $region9: #{tpu_custom_call.1} parent=1 // pred_fallthru
      _
    // Predicated region
    $region10: #{tpu_custom_call.1} parent=1 // pred_check
      _
    $region11: #{tpu_custom_call.1} parent=1 // pred_check_branch
      %36 = sbr.rel (0) target = $region13
    $region12: #{tpu_custom_call.1} parent=1 // pred_region
      %s38 = ssub.s32 32, 32
      %39 = vsyncadd [#allocation7], %s38
      %s41 = sshll.u32 [#allocation8], 4
      %s42 = int_to_ptr.vmem [resolvable:$true] %s41
      %44 = dma.hbm_to_vmem [thread:$0]  %s2, 32, %s42, [#allocation7]
    $region13: #{tpu_custom_call.1} parent=1 // pred_fallthru
      _
    // Predicated region
    $region14: #{tpu_custom_call.1} parent=1 // pred_check
      _
    $region15: #{tpu_custom_call.1} parent=1 // pred_check_branch
      %46 = sbr.rel (0) target = $region17
    $region16: #{tpu_custom_call.1} parent=1 // pred_region
      %47 = dma.done [#allocation4], 1024
    $region17: #{tpu_custom_call.1} parent=1 // pred_fallthru
      _
    // Predicated region
    $region18: #{tpu_custom_call.1} parent=1 // pred_check
      _
    $region19: #{tpu_custom_call.1} parent=1 // pred_check_branch
      %49 = sbr.rel (0) target = $region21
    $region20: #{tpu_custom_call.1} parent=1 // pred_region
      %50 = dma.done [#allocation7], 8192
    $region21: #{tpu_custom_call.1} parent=1 // pred_fallthru
      _
    // Predicated region
    $region22: #{tpu_custom_call.1} parent=1 // pred_check
      _
    $region23: #{tpu_custom_call.1} parent=1 // pred_check_branch
      %52 = sbr.rel (0) target = $region25
    $region24: #{tpu_custom_call.1} parent=1 // pred_region
      %53 = dma.done [#allocation7], 32
    $region25: #{tpu_custom_call.1} parent=1 // pred_fallthru
      _
    %p54 = scmp.eq.s32.totalorder 0, 0
    // Predicated region
    $region26: #{tpu_custom_call.1} parent=1 // pred_check
      %p55 = pneg %p54
    $region27: #{tpu_custom_call.1} parent=1 // pred_check_branch
      %57 = sbr.rel (%p55) target = $region29
    $region28: #{tpu_custom_call.1} parent=1 // pred_region
      %58 = vst [vmem:[#allocation2] sm:$0xff] 0.0
      %59 = vst [vmem:[#allocation2 + $0x8] sm:$0xff] 0.0
      %60 = vst [vmem:[#allocation2 + $0x10] sm:$0xff] 0.0
      %61 = vst [vmem:[#allocation2 + $0x18] sm:$0xff] 0.0
      %62 = vst [vmem:[#allocation2 + $0x20] sm:$0xff] 0.0
      %63 = vst [vmem:[#allocation2 + $0x28] sm:$0xff] 0.0
      %64 = vst [vmem:[#allocation2 + $0x30] sm:$0xff] 0.0
      %65 = vst [vmem:[#allocation2 + $0x38] sm:$0xff] 0.0
    $region29: #{tpu_custom_call.1} parent=1 // pred_fallthru
      _
    %v66 = vld [vmem:[#allocation2] sm:$0xff]
    %v67 = vld [vmem:[#allocation2 + $0x8] sm:$0xff]
    %v68 = vld [vmem:[#allocation2 + $0x10] sm:$0xff]
    %v69 = vld [vmem:[#allocation2 + $0x18] sm:$0xff]
    %v70 = vld [vmem:[#allocation2 + $0x20] sm:$0xff]
    %v71 = vld [vmem:[#allocation2 + $0x28] sm:$0xff]
    %v72 = vld [vmem:[#allocation2 + $0x30] sm:$0xff]
    %v73 = vld [vmem:[#allocation2 + $0x38] sm:$0xff]
    %v74 = vld [vmem:[#allocation3] sm:$0xff]
    %v75 = vld [vmem:[#allocation3 + $0x8] sm:$0xff]
    %v76 = vld [vmem:[#allocation3 + $0x10] sm:$0xff]
    %v77 = vld [vmem:[#allocation3 + $0x18] sm:$0xff]
    %v78 = vld [vmem:[#allocation3 + $0x20] sm:$0xff]
    %v79 = vld [vmem:[#allocation3 + $0x28] sm:$0xff]
    %v80 = vld [vmem:[#allocation3 + $0x30] sm:$0xff]
    %v81 = vld [vmem:[#allocation3 + $0x38] sm:$0xff]
    %v82 = vld [vmem:[#allocation6] sm:$0xff]
    %v83 = vld [vmem:[#allocation6 + $0x8] sm:$0xff]
    %v84 = vld [vmem:[#allocation6 + $0x10] sm:$0xff]
    %v85 = vld [vmem:[#allocation6 + $0x18] sm:$0xff]
    %v86 = vld [vmem:[#allocation6 + $0x20] sm:$0xff]
    %v87 = vld [vmem:[#allocation6 + $0x28] sm:$0xff]
    %v88 = vld [vmem:[#allocation6 + $0x30] sm:$0xff]
    %v89 = vld [vmem:[#allocation6 + $0x38] sm:$0xff]
    %v90 = vld [vmem:[#allocation6 + $0x40] sm:$0xff]
    %v91 = vld [vmem:[#allocation6 + $0x48] sm:$0xff]
    %v92 = vld [vmem:[#allocation6 + $0x50] sm:$0xff]
    %v93 = vld [vmem:[#allocation6 + $0x58] sm:$0xff]
    %v94 = vld [vmem:[#allocation6 + $0x60] sm:$0xff]
    %v95 = vld [vmem:[#allocation6 + $0x68] sm:$0xff]
    %v96 = vld [vmem:[#allocation6 + $0x70] sm:$0xff]
    %v97 = vld [vmem:[#allocation6 + $0x78] sm:$0xff]
    %v98 = vld [vmem:[#allocation6 + $0x80] sm:$0xff]
    %v99 = vld [vmem:[#allocation6 + $0x88] sm:$0xff]
    %v100 = vld [vmem:[#allocation6 + $0x90] sm:$0xff]
    %v101 = vld [vmem:[#allocation6 + $0x98] sm:$0xff]
    %v102 = vld [vmem:[#allocation6 + $0xa0] sm:$0xff]
    %v103 = vld [vmem:[#allocation6 + $0xa8] sm:$0xff]
    %v104 = vld [vmem:[#allocation6 + $0xb0] sm:$0xff]
    %v105 = vld [vmem:[#allocation6 + $0xb8] sm:$0xff]
    %v106 = vld [vmem:[#allocation6 + $0xc0] sm:$0xff]
    %v107 = vld [vmem:[#allocation6 + $0xc8] sm:$0xff]
    %v108 = vld [vmem:[#allocation6 + $0xd0] sm:$0xff]
    %v109 = vld [vmem:[#allocation6 + $0xd8] sm:$0xff]
    %v110 = vld [vmem:[#allocation6 + $0xe0] sm:$0xff]
    %v111 = vld [vmem:[#allocation6 + $0xe8] sm:$0xff]
    %v112 = vld [vmem:[#allocation6 + $0xf0] sm:$0xff]
    %v113 = vld [vmem:[#allocation6 + $0xf8] sm:$0xff]
    %v114 = vld [vmem:[#allocation6 + $0x100] sm:$0xff]
    %v115 = vld [vmem:[#allocation6 + $0x108] sm:$0xff]
    %v116 = vld [vmem:[#allocation6 + $0x110] sm:$0xff]
    %v117 = vld [vmem:[#allocation6 + $0x118] sm:$0xff]
    %v118 = vld [vmem:[#allocation6 + $0x120] sm:$0xff]
    %v119 = vld [vmem:[#allocation6 + $0x128] sm:$0xff]
    %v120 = vld [vmem:[#allocation6 + $0x130] sm:$0xff]
    %v121 = vld [vmem:[#allocation6 + $0x138] sm:$0xff]
    %v122 = vld [vmem:[#allocation6 + $0x140] sm:$0xff]
    %v123 = vld [vmem:[#allocation6 + $0x148] sm:$0xff]
    %v124 = vld [vmem:[#allocation6 + $0x150] sm:$0xff]
    %v125 = vld [vmem:[#allocation6 + $0x158] sm:$0xff]
    %v126 = vld [vmem:[#allocation6 + $0x160] sm:$0xff]
    %v127 = vld [vmem:[#allocation6 + $0x168] sm:$0xff]
    %v128 = vld [vmem:[#allocation6 + $0x170] sm:$0xff]
    %v129 = vld [vmem:[#allocation6 + $0x178] sm:$0xff]
    %v130 = vld [vmem:[#allocation6 + $0x180] sm:$0xff]
    %v131 = vld [vmem:[#allocation6 + $0x188] sm:$0xff]
    %v132 = vld [vmem:[#allocation6 + $0x190] sm:$0xff]
    %v133 = vld [vmem:[#allocation6 + $0x198] sm:$0xff]
    %v134 = vld [vmem:[#allocation6 + $0x1a0] sm:$0xff]
    %v135 = vld [vmem:[#allocation6 + $0x1a8] sm:$0xff]
    %v136 = vld [vmem:[#allocation6 + $0x1b0] sm:$0xff]
    %v137 = vld [vmem:[#allocation6 + $0x1b8] sm:$0xff]
    %v138 = vld [vmem:[#allocation6 + $0x1c0] sm:$0xff]
    %v139 = vld [vmem:[#allocation6 + $0x1c8] sm:$0xff]
    %v140 = vld [vmem:[#allocation6 + $0x1d0] sm:$0xff]
    %v141 = vld [vmem:[#allocation6 + $0x1d8] sm:$0xff]
    %v142 = vld [vmem:[#allocation6 + $0x1e0] sm:$0xff]
    %v143 = vld [vmem:[#allocation6 + $0x1e8] sm:$0xff]
    %v144 = vld [vmem:[#allocation6 + $0x1f0] sm:$0xff]
    %v145 = vld [vmem:[#allocation6 + $0x1f8] sm:$0xff]
    %146 = vmatprep.subr.mxu0 %v83
    %147 = vmatpush1.msra.mxu0 %v82
    %148 = vmatprep.subr.mxu0 %v85
    %149 = vmatpush1.msra.mxu0 %v84
    %150 = vmatprep.subr.mxu0 %v87
    %151 = vmatpush1.msra.mxu0 %v86
    %152 = vmatprep.subr.mxu0 %v89
    %153 = vmatpush1.msra.mxu0 %v88
    %154 = vmatprep.subr.mxu0 %v91
    %155 = vmatpush1.msra.mxu0 %v90
    %156 = vmatprep.subr.mxu0 %v93
    %157 = vmatpush1.msra.mxu0 %v92
    %158 = vmatprep.subr.mxu0 %v95
    %159 = vmatpush1.msra.mxu0 %v94
    %160 = vmatprep.subr.mxu0 %v97
    %161 = vmatpush1.msra.mxu0 %v96
    %162 = vmatprep.subr.mxu0 %v99
    %163 = vmatpush1.msra.mxu0 %v98
    %164 = vmatprep.subr.mxu0 %v101
    %165 = vmatpush1.msra.mxu0 %v100
    %166 = vmatprep.subr.mxu0 %v103
    %167 = vmatpush1.msra.mxu0 %v102
    %168 = vmatprep.subr.mxu0 %v105
    %169 = vmatpush1.msra.mxu0 %v104
    %170 = vmatprep.subr.mxu0 %v107
    %171 = vmatpush1.msra.mxu0 %v106
    %172 = vmatprep.subr.mxu0 %v109
    %173 = vmatpush1.msra.mxu0 %v108
    %174 = vmatprep.subr.mxu0 %v111
    %175 = vmatpush1.msra.mxu0 %v110
    %176 = vmatprep.subr.mxu0 %v113
    %177 = vmatpush1.msra.mxu0 %v112
    %178 = vmatprep.subr.mxu0 %v115
    %179 = vmatpush1.msra.mxu0 %v114
    %180 = vmatprep.subr.mxu0 %v117
    %181 = vmatpush1.msra.mxu0 %v116
    %182 = vmatprep.subr.mxu0 %v119
    %183 = vmatpush1.msra.mxu0 %v118
    %184 = vmatprep.subr.mxu0 %v121
    %185 = vmatpush1.msra.mxu0 %v120
    %186 = vmatprep.subr.mxu0 %v123
    %187 = vmatpush1.msra.mxu0 %v122
    %188 = vmatprep.subr.mxu0 %v125
    %189 = vmatpush1.msra.mxu0 %v124
    %190 = vmatprep.subr.mxu0 %v127
    %191 = vmatpush1.msra.mxu0 %v126
    %192 = vmatprep.subr.mxu0 %v129
    %193 = vmatpush1.msra.mxu0 %v128
    %194 = vmatprep.subr.mxu0 %v131
    %195 = vmatpush1.msra.mxu0 %v130
    %196 = vmatprep.subr.mxu0 %v133
    %197 = vmatpush1.msra.mxu0 %v132
    %198 = vmatprep.subr.mxu0 %v135
    %199 = vmatpush1.msra.mxu0 %v134
    %200 = vmatprep.subr.mxu0 %v137
    %201 = vmatpush1.msra.mxu0 %v136
    %202 = vmatprep.subr.mxu0 %v139
    %203 = vmatpush1.msra.mxu0 %v138
    %204 = vmatprep.subr.mxu0 %v141
    %205 = vmatpush1.msra.mxu0 %v140
    %206 = vmatprep.subr.mxu0 %v143
    %207 = vmatpush1.msra.mxu0 %v142
    %208 = vmatprep.subr.mxu0 %v145
    %209 = vmatpush1.msra.mxu0 %v144
    %210 = vmatprep.mubr.f32.mxu0 %v75
    %211 = vmatmul.mubr.f32.gmra.mrb[0].mxu0 %v74
    %v212 = vpop.f32.mrb[0].mxu0
    %v213 = vadd.f32 0.0, %v212
    %v214 = vpop.f32.mrb[0].mxu0
    %v215 = vadd.f32 0.0, %v214
    %216 = vmatprep.mubr.f32.mxu0 %v77
    %217 = vmatmul.mubr.f32.gmra.mrb[0].mxu0 %v76
    %v218 = vpop.f32.mrb[0].mxu0
    %v219 = vadd.f32 0.0, %v218
    %v220 = vpop.f32.mrb[0].mxu0
    %v221 = vadd.f32 0.0, %v220
    %222 = vmatprep.mubr.f32.mxu0 %v79
    %223 = vmatmul.mubr.f32.gmra.mrb[0].mxu0 %v78
    %v224 = vpop.f32.mrb[0].mxu0
    %v225 = vadd.f32 0.0, %v224
    %v226 = vpop.f32.mrb[0].mxu0
    %v227 = vadd.f32 0.0, %v226
    %228 = vmatprep.mubr.f32.mxu0 %v81
    %229 = vmatmul.mubr.f32.gmra.mrb[0].mxu0 %v80
    %v230 = vpop.f32.mrb[0].mxu0
    %v231 = vadd.f32 0.0, %v230
    %v232 = vpop.f32.mrb[0].mxu0
    %v233 = vadd.f32 0.0, %v232
    %234 = vdwg.mxu0
    %v235 = vadd.f32 %v66, %v213
    %v236 = vadd.f32 %v67, %v215
    %v237 = vadd.f32 %v68, %v219
    %v238 = vadd.f32 %v69, %v221
    %v239 = vadd.f32 %v70, %v225
    %v240 = vadd.f32 %v71, %v227
    %v241 = vadd.f32 %v72, %v231
    %v242 = vadd.f32 %v73, %v233
    %243 = vst [vmem:[#allocation2] sm:$0xff] %v235
    %244 = vst [vmem:[#allocation2 + $0x8] sm:$0xff] %v236
    %245 = vst [vmem:[#allocation2 + $0x10] sm:$0xff] %v237
    %246 = vst [vmem:[#allocation2 + $0x18] sm:$0xff] %v238
    %247 = vst [vmem:[#allocation2 + $0x20] sm:$0xff] %v239
    %248 = vst [vmem:[#allocation2 + $0x28] sm:$0xff] %v240
    %249 = vst [vmem:[#allocation2 + $0x30] sm:$0xff] %v241
    %250 = vst [vmem:[#allocation2 + $0x38] sm:$0xff] %v242
    // Predicated region
    $region30: #{tpu_custom_call.1} parent=1 // pred_check
      %p251 = pneg %p54
    $region31: #{tpu_custom_call.1} parent=1 // pred_check_branch
      %253 = sbr.rel (%p251) target = $region33
    $region32: #{tpu_custom_call.1} parent=1 // pred_region
      %v254 = vld [vmem:[#allocation2] sm:$0xff]
      %v255 = vld [vmem:[#allocation2 + $0x8] sm:$0xff]
      %v256 = vld [vmem:[#allocation2 + $0x10] sm:$0xff]
      %v257 = vld [vmem:[#allocation2 + $0x18] sm:$0xff]
      %v258 = vld [vmem:[#allocation2 + $0x20] sm:$0xff]
      %v259 = vld [vmem:[#allocation2 + $0x28] sm:$0xff]
      %v260 = vld [vmem:[#allocation2 + $0x30] sm:$0xff]
      %v261 = vld [vmem:[#allocation2 + $0x38] sm:$0xff]
      %v262 = vld [vmem:[#allocation8] sm:$0x3]
      %v264 = vlaneseq
      %v265 = vshrl.u32 %v264, 7
      %v266 = vsub.s32 0, %v265
      %v267 = vrot.slane %v262, %v266
      %v268 = vlaneseq
      %v269 = vshrl.u32 %v268, 7
      %v270 = vsub.s32 1, %v269
      %v271 = vrot.slane %v262, %v270
      %v274 = vadd.f32 %v254, %v267
      %v275 = vadd.f32 %v255, %v271
      %v276 = vadd.f32 %v256, %v267
      %v277 = vadd.f32 %v257, %v271
      %v278 = vadd.f32 %v258, %v267
      %v279 = vadd.f32 %v259, %v271
      %v280 = vadd.f32 %v260, %v267
      %v281 = vadd.f32 %v261, %v271
      %v282 = vmax.f32 %v274, 0.0
      %v283 = vmax.f32 %v275, 0.0
      %v284 = vmax.f32 %v276, 0.0
      %v285 = vmax.f32 %v277, 0.0
      %v286 = vmax.f32 %v278, 0.0
      %v287 = vmax.f32 %v279, 0.0
      %v288 = vmax.f32 %v280, 0.0
      %v289 = vmax.f32 %v281, 0.0
      %290 = vst [vmem:[#allocation9] sm:$0xff] %v282
      %291 = vst [vmem:[#allocation9 + $0x8] sm:$0xff] %v283
      %292 = vst [vmem:[#allocation9 + $0x10] sm:$0xff] %v284
      %293 = vst [vmem:[#allocation9 + $0x18] sm:$0xff] %v285
      %294 = vst [vmem:[#allocation9 + $0x20] sm:$0xff] %v286
      %295 = vst [vmem:[#allocation9 + $0x28] sm:$0xff] %v287
      %296 = vst [vmem:[#allocation9 + $0x30] sm:$0xff] %v288
      %297 = vst [vmem:[#allocation9 + $0x38] sm:$0xff] %v289
    $region33: #{tpu_custom_call.1} parent=1 // pred_fallthru
      _
    // Predicated region
    $region34: #{tpu_custom_call.1} parent=1 // pred_check
      _
    $region35: #{tpu_custom_call.1} parent=1 // pred_check_branch
      %299 = sbr.rel (0) target = $region37
    $region36: #{tpu_custom_call.1} parent=1 // pred_region
      %s301 = ssub.s32 1024, 1024
      %302 = vsyncadd [#allocation5], %s301
      %s303 = sshll.u32 [#allocation9], 4
      %s304 = int_to_ptr.vmem [resolvable:$true] %s303
      %309 = dma.vmem_to_hbm [thread:$0]  %s304, 1024, %s3, [#allocation5], 256, 256, 16
    $region37: #{tpu_custom_call.1} parent=1 // pred_fallthru
      _
    // Predicated region
    $region38: #{tpu_custom_call.1} parent=1 // pred_check
      _
    $region39: #{tpu_custom_call.1} parent=1 // pred_check_branch
      %311 = sbr.rel (0) target = $region41
    $region40: #{tpu_custom_call.1} parent=1 // pred_region
      %312 = dma.done [#allocation5], 1024
    $region41: #{tpu_custom_call.1} parent=1 // pred_fallthru
      _
    %313 = vsyncpa [#allocation4], 1
    %314 = vsyncpa [#allocation7], 1
    %315 = vsyncpa [#allocation5], 1

</llo_original>
